<compile_context>
chip_gen: v5e
topology: v5e:2x2
jax: 0.10.0
libtpu: 0.0.40
codegen_flags: <defaults>
</compile_context>

<pallas_src>
import functools

import jax
import jax.numpy as jnp
from jax.experimental import pallas as pl
from jax.experimental.pallas import tpu as pltpu


def policy_kernel(n, offset, d_is_one, logvar_ref, x_ref, w_ref, b_ref,
                  noise_ref, out_ref):
    x = x_ref[...].astype(jnp.float32)            # (TB, In)
    w = w_ref[...].astype(jnp.float32)            # (1, In) if d_is_one else (In, D)
    b = b_ref[...].astype(jnp.float32)            # (1, D)

    if d_is_one:
        # D == 1: an MXU tile would be <1% utilized -> VPU multiply + lane reduce.
        # (TB, 1); broadcasts over the n lanes of the output tile below.
        mu_rep = jnp.sum(x * w, axis=-1, keepdims=True) + b
    else:
        mu = jnp.dot(x, w, preferred_element_type=jnp.float32) + b   # (TB, D)
        # repeat_interleave along rows == lane-axis tile in the (TB, n*D) view.
        mu_rep = jnp.tile(mu, (1, n))                                 # (TB, n*D)

    # LogVar head: var = exp(log_var_param) + offset (scalar; rides the EUP slot).
    var = jnp.exp(logvar_ref[0]) + offset

    noise = noise_ref[...].astype(jnp.float32)     # (TB, n*D)
    out_ref[...] = (mu_rep + noise * var).astype(out_ref.dtype)


def _pick_batch_tile(batch, max_rows=256):
    """Largest row tile <= max_rows that divides batch and keeps sublane alignment."""
    tb = min(batch, max_rows)
    while tb > 1:
        if batch % tb == 0 and (tb == batch or tb % 8 == 0):
            return tb
        tb -= 1
    return batch   # no aligned divisor found: fall back to one whole-batch block


def policy_forward(x, w, b, logvar, noise, *, n, offset=0.5):
    """out = repeat_interleave(x @ w + b, n, 0) + noise * (exp(logvar) + offset)."""
    batch, inp_dim = x.shape
    out_dim = w.shape[1]
    assert b.shape == (1, out_dim)
    assert noise.shape == (n * batch, out_dim)

    d_is_one = (out_dim == 1)
    tb = _pick_batch_tile(batch)
    grid = (batch // tb,)

    # (n*B, D) and (B, n*D) share the same memory layout: free reshape that makes
    # the noise/output tiles lane-denser and turns the repeat into a broadcast.
    noise2d = noise.reshape(batch, n * out_dim)

    if d_is_one:
        w_k = w.reshape(1, inp_dim)          # free reshape: features onto lanes
        w_spec = pl.BlockSpec((1, inp_dim), lambda i: (0, 0))
    else:
        w_k = w
        w_spec = pl.BlockSpec((inp_dim, out_dim), lambda i: (0, 0))

    kernel = functools.partial(policy_kernel, n, offset, d_is_one)
    out2d = pl.pallas_call(
        kernel,
        out_shape=jax.ShapeDtypeStruct((batch, n * out_dim), jnp.float32),
        grid=grid,
        in_specs=[
            pl.BlockSpec(memory_space=pltpu.MemorySpace.SMEM),      # logvar (scalar param)
            pl.BlockSpec((tb, inp_dim), lambda i: (i, 0)),          # x batch tile
            w_spec,                                                 # weight, resident
            pl.BlockSpec((1, out_dim), lambda i: (0, 0)),           # bias, resident
            pl.BlockSpec((tb, n * out_dim), lambda i: (i, 0)),      # noise batch tile
        ],
        out_specs=pl.BlockSpec((tb, n * out_dim), lambda i: (i, 0)),
        compiler_params=pltpu.CompilerParams(
            dimension_semantics=("parallel",),     # shard batch tiles across TCs (v7x)
            vmem_limit_bytes=32 * 1024 * 1024,     # >= default on all gens, <= physical
        ),
    )(logvar, x, w_k, b, noise2d)

    return out2d.reshape(n * batch, out_dim)


if __name__ == "__main__":
    # out_dim=1 matches the torch code's implicit broadcasting assumption
    # (samples are drawn as (n*B,) then .view(-1, out_dim)).
    B, inp_dim, out_dim, n = 8, 32, 1, 4
    var_init, offset = 1.5, 0.5

    key = jax.random.PRNGKey(0)
    kx, kw, kb, kn = jax.random.split(key, 4)

    x = jax.random.normal(kx, (B, inp_dim), jnp.float32)
    # NOTE: the torch module zero-inits the Linear (init_weights); we use small
    # deterministic nonzero params so the compute path is actually exercised.
    w = 0.1 * jax.random.normal(kw, (inp_dim, out_dim), jnp.float32)
    b = 0.1 * jax.random.normal(kb, (1, out_dim), jnp.float32)
    logvar = jnp.array([jnp.log(var_init)], jnp.float32)            # LogVar.var param

    # Normal(0,1).sample((n*B,)).view(-1, out_dim)  (RNG source is JAX, not torch)
    noise = jax.random.normal(kn, (n * B,), jnp.float32).reshape(-1, out_dim)

    out = jax.block_until_ready(policy_forward(x, w, b, logvar, noise, n=n, offset=offset))

    # pure-JAX reference check of the forward semantics
    mu_ref = x @ w + b
    mu_rep_ref = jnp.repeat(mu_ref, n, axis=0)
    expected = mu_rep_ref + noise * (jnp.exp(logvar[0]) + offset)
    assert out.shape == (n * B, out_dim)
    assert jnp.allclose(out, expected, atol=1e-5, rtol=1e-5)

    print("KERNEL_OK")
</pallas_src>

<mosaic_0001>
module attributes {stable_mosaic.version = 11 : i64} {
  func.func @policy_kernel(%arg0: i32, %arg1: memref<1xf32, #tpu.memory_space<smem>>, %arg2: memref<8x32xf32, #tpu.memory_space<vmem>>, %arg3: memref<1x32xf32, #tpu.memory_space<vmem>>, %arg4: memref<1x1xf32, #tpu.memory_space<vmem>>, %arg5: memref<8x4xf32, #tpu.memory_space<vmem>>, %arg6: memref<8x4xf32, #tpu.memory_space<vmem>>) attributes {dimension_semantics = [#tpu.dimension_semantics<parallel>], iteration_bounds = array<i64: 1>, scalar_prefetch = 0 : i64, scratch_operands = 0 : i64, tpu.core_type = #tpu.core_type<tc>, window_params = [{transform_indices = @transform_0, window_bounds = array<i64: 1>}, {transform_indices = @transform_1, window_bounds = array<i64: 8, 32>}, {pipeline_mode = #tpu.pipeline_mode<synchronous>, transform_indices = @transform_2, window_bounds = array<i64: 1, 32>}, {pipeline_mode = #tpu.pipeline_mode<synchronous>, transform_indices = @transform_3, window_bounds = array<i64: 1, 1>}, {transform_indices = @transform_4, window_bounds = array<i64: 8, 4>}, {transform_indices = @transform_5, window_bounds = array<i64: 8, 4>}]} {
    %c0 = arith.constant 0 : index
    %c0_0 = arith.constant 0 : index
    %0 = vector.load %arg2[%c0, %c0_0] : memref<8x32xf32, #tpu.memory_space<vmem>>, vector<8x32xf32>
    %c0_1 = arith.constant 0 : index
    %c0_2 = arith.constant 0 : index
    %1 = vector.load %arg3[%c0_1, %c0_2] : memref<1x32xf32, #tpu.memory_space<vmem>>, vector<1x32xf32>
    %c0_3 = arith.constant 0 : index
    %c0_4 = arith.constant 0 : index
    %2 = vector.load %arg4[%c0_3, %c0_4] : memref<1x1xf32, #tpu.memory_space<vmem>>, vector<1x1xf32>
    %3 = vector.broadcast %1 : vector<1x32xf32> to vector<8x32xf32>
    %4 = arith.mulf %0, %3 : vector<8x32xf32>
    %cst = arith.constant dense<0.000000e+00> : vector<8xf32>
    %5 = vector.multi_reduction <add>, %4, %cst [1] : vector<8x32xf32> to vector<8xf32>
    %6 = vector.shape_cast %5 : vector<8xf32> to vector<8x1xf32>
    %7 = vector.broadcast %2 : vector<1x1xf32> to vector<8x1xf32>
    %8 = arith.addf %6, %7 : vector<8x1xf32>
    %c0_5 = arith.constant 0 : index
    %9 = memref.load %arg1[%c0_5] : memref<1xf32, #tpu.memory_space<smem>>
    %10 = math.exp %9 : f32
    %cst_6 = arith.constant 5.000000e-01 : f32
    %11 = arith.addf %10, %cst_6 : f32
    %c0_7 = arith.constant 0 : index
    %c0_8 = arith.constant 0 : index
    %12 = vector.load %arg5[%c0_7, %c0_8] : memref<8x4xf32, #tpu.memory_space<vmem>>, vector<8x4xf32>
    %13 = vector.broadcast %11 : f32 to vector<8x4xf32>
    %14 = arith.mulf %12, %13 : vector<8x4xf32>
    %15 = vector.broadcast %8 : vector<8x1xf32> to vector<8x4xf32>
    %16 = arith.addf %15, %14 : vector<8x4xf32>
    %c0_9 = arith.constant 0 : index
    %c0_10 = arith.constant 0 : index
    %17 = vector.load %arg6[%c0_9, %c0_10] : memref<8x4xf32, #tpu.memory_space<vmem>>, vector<8x4xf32>
    tpu.vector_store %arg6[%c0_9, %c0_10], %16 {strides = array<i32>} : memref<8x4xf32, #tpu.memory_space<vmem>>, vector<8x4xf32>,
    return
  }
  func.func @transform_0(%arg0: i32) -> i32 {
    %c0_i32 = arith.constant 0 : i32
    %c0_i32_0 = arith.constant 0 : i32
    return %c0_i32 : i32
  }
  func.func @transform_1(%arg0: i32) -> (i32, i32) {
    %c0_i32 = arith.constant 0 : i32
    %c0_i32_0 = arith.constant 0 : i32
    return %arg0, %c0_i32 : i32, i32
  }
  func.func @transform_2(%arg0: i32) -> (i32, i32) {
    %c0_i32 = arith.constant 0 : i32
    %c0_i32_0 = arith.constant 0 : i32
    %c0_i32_1 = arith.constant 0 : i32
    return %c0_i32, %c0_i32_0 : i32, i32
  }
  func.func @transform_3(%arg0: i32) -> (i32, i32) {
    %c0_i32 = arith.constant 0 : i32
    %c0_i32_0 = arith.constant 0 : i32
    %c0_i32_1 = arith.constant 0 : i32
    return %c0_i32, %c0_i32_0 : i32, i32
  }
  func.func @transform_4(%arg0: i32) -> (i32, i32) {
    %c0_i32 = arith.constant 0 : i32
    %c0_i32_0 = arith.constant 0 : i32
    return %arg0, %c0_i32 : i32, i32
  }
  func.func @transform_5(%arg0: i32) -> (i32, i32) {
    %c0_i32 = arith.constant 0 : i32
    %c0_i32_0 = arith.constant 0 : i32
    return %arg0, %c0_i32 : i32, i32
  }
}

</mosaic_0001>

<llo_original>
// kernel: tpu_custom_call.1
$region0: #{tpu_custom_call.1}
  #allocation0 [shape = 'u32[]', space=smem, size = 0x4, offset = 0x4, fixed_abs, tag = 'smem constant byte address 0x4 - core index']
  #allocation1 [shape = 'u32[72,128]{1,0:T(1,128)}', space=vmem, size = 0x9000, scoped, tag = 'internal scratch']
  #allocation2 [shape = 'f32[1]{0:T(128)S(6)}', space=smem, size = 0x200, scoped, tag = 'scoped memory for tpu_custom_call.1']
  #allocation3 [shape = 'f32[1,1]{1,0:T(1,128)S(1)}', space=vmem, size = 0x200, scoped, tag = 'scoped memory for tpu_custom_call.1']
  %s0 = inlined_call_operand.<no memory space> [shape: f32[1], index: 0, kind: input, shape index: {}]
  %s1 = inlined_call_operand.vmem [shape: f32[8,32], index: 1, kind: input, shape index: {}]
  %s2 = inlined_call_operand.vmem [shape: f32[1,32], index: 2, kind: input, shape index: {}]
  %s3 = inlined_call_operand.<no memory space> [shape: f32[1,1], index: 3, kind: input, shape index: {}]
  %s4 = inlined_call_operand.vmem [shape: f32[8,4], index: 4, kind: input, shape index: {}]
  %s5 = inlined_call_operand.vmem [shape: f32[8,4], index: 5, kind: output, shape index: {}]
  %s6 = sld [smem:[#allocation0]]
  $region30: #{tpu_custom_call.1} parent=0
    _
  %s8 = ssub.s32 1, %s6
  %s9 = scalar_select 0, %s8, %s6
  %10 = sst [smem:[#allocation2]] %s0
  %v11 = vstv %s3
  %12 = vst [vmem:[#allocation3] sm:$0x1] %v11
  // Predicated region
  $region2: #{tpu_custom_call.1} parent=0 // pred_check
    _
  $region3: #{tpu_custom_call.1} parent=0 // pred_check_branch
    %14 = sbr.rel (0) target = $region5
  $region4: #{tpu_custom_call.1} parent=0 // pred_region
    _
  $region5: #{tpu_custom_call.1} parent=0 // pred_fallthru
    _
  // Predicated region
  $region6: #{tpu_custom_call.1} parent=0 // pred_check
    _
  $region7: #{tpu_custom_call.1} parent=0 // pred_check_branch
    %16 = sbr.rel (0) target = $region9
  $region8: #{tpu_custom_call.1} parent=0 // pred_region
    _
  $region9: #{tpu_custom_call.1} parent=0 // pred_fallthru
    _
  // Predicated region
  $region10: #{tpu_custom_call.1} parent=0 // pred_check
    _
  $region11: #{tpu_custom_call.1} parent=0 // pred_check_branch
    %18 = sbr.rel (0) target = $region13
  $region12: #{tpu_custom_call.1} parent=0 // pred_region
    _
  $region13: #{tpu_custom_call.1} parent=0 // pred_fallthru
    _
  // Predicated region
  $region14: #{tpu_custom_call.1} parent=0 // pred_check
    _
  $region15: #{tpu_custom_call.1} parent=0 // pred_check_branch
    %20 = sbr.rel (0) target = $region17
  $region16: #{tpu_custom_call.1} parent=0 // pred_region
    _
  $region17: #{tpu_custom_call.1} parent=0 // pred_fallthru
    _
  // Predicated region
  $region18: #{tpu_custom_call.1} parent=0 // pred_check
    _
  $region19: #{tpu_custom_call.1} parent=0 // pred_check_branch
    %22 = sbr.rel (0) target = $region21
  $region20: #{tpu_custom_call.1} parent=0 // pred_region
    _
  $region21: #{tpu_custom_call.1} parent=0 // pred_fallthru
    _
  %v23 = vld [vmem:[%s1] sm:$0xff]
  %v24 = vld [vmem:[%s2] sm:$0x1]
  %v25 = vld [vmem:[#allocation3] sm:$0x1]
  %v27 = vperm.slane %v24, 0
  %v29 = vmul.f32 %v23, %v27
  %vm30 = vcmask 261120
  %v31 = vsel %vm30, %v29, 0.0
  %32 = vadd.xlane.f32.xlu0 %v31
  %v33 = vpop.xlane.xlu0 %32
  %v35 = vperm.slane %v25, 0
  %v37 = vadd.f32 %v33, %v35
  %s38 = sld [smem:[#allocation2]]
  %v39 = vstv %s38
  %v40 = vmul.f32 %v39, 1.442695
  %v41 = vpow.pop %v40
  %s42 = vtos %v41
  %s43 = sadd.f32 %s42, 0.5
  %v44 = vld [vmem:[%s4] sm:$0xff]
  %v45 = vstv %s43
  %v46 = vmul.f32 %v44, %v45
  %48 = vset.pattern.permute.xlu0 0
  %49 = vperm.xlu0 %48, %v37
  %v50 = vpop.permute.xlu0 %49
  %v52 = vadd.f32 %v50, %v46
  %vm53 = vcmask 31744
  %54 = vst.msk [vmem:[%s5] sm:$0xff] %vm53, %v52
  // Predicated region
  $region22: #{tpu_custom_call.1} parent=0 // pred_check
    _
  $region23: #{tpu_custom_call.1} parent=0 // pred_check_branch
    %56 = sbr.rel (0) target = $region25
  $region24: #{tpu_custom_call.1} parent=0 // pred_region
    _
  $region25: #{tpu_custom_call.1} parent=0 // pred_fallthru
    _
  // Predicated region
  $region26: #{tpu_custom_call.1} parent=0 // pred_check
    _
  $region27: #{tpu_custom_call.1} parent=0 // pred_check_branch
    %58 = sbr.rel (0) target = $region29
  $region28: #{tpu_custom_call.1} parent=0 // pred_region
    _
  $region29: #{tpu_custom_call.1} parent=0 // pred_fallthru
    _

</llo_original>
